<compile_context>
chip_gen: v6e
topology: v6e:2x2x1
jax: 0.10.0
libtpu: 0.0.40
codegen_flags: <defaults>
</compile_context>

<pallas_src>
import math

import jax
import jax.numpy as jnp
from jax.experimental import pallas as pl
from jax.experimental.pallas import tpu as pltpu


# ---------------------------------------------------------------------------
# Zero-copy path: output aliases the input buffer; no data movement at all.
# ---------------------------------------------------------------------------
def _identity_alias_kernel(x_ref, o_ref):
    # Output buffer IS the input buffer (input_output_aliases={0: 0}); the
    # data is already in place, so just pin a read+write dependency on the
    # aliased output without moving any bytes.
    del x_ref
    pltpu.touch(o_ref)


def _identity_flatten_alias(x2: jax.Array) -> jax.Array:
    n, f = x2.shape
    return pl.pallas_call(
        _identity_alias_kernel,
        out_shape=jax.ShapeDtypeStruct((n, f), x2.dtype),
        in_specs=[pl.BlockSpec(memory_space=pl.ANY)],   # stay in HBM, no auto-DMA
        out_specs=pl.BlockSpec(memory_space=pl.ANY),
        input_output_aliases={0: 0},
    )(x2)


# ---------------------------------------------------------------------------
# Materializing copy path (only when a real copy is wanted / aliasing fails).
# ---------------------------------------------------------------------------
def _copy_kernel(x_ref, o_ref):
    o_ref[...] = x_ref[...]


def _identity_flatten_copy(x2: jax.Array, *, vmem_budget_bytes: int = 8 << 20) -> jax.Array:
    n, f = x2.shape
    total = n * f
    itemsize = jnp.dtype(x2.dtype).itemsize

    # Lane width W: multiple of 128 dividing the flat size, preferring one
    # whose row count is a multiple of 8 (full sublane + lane density ->
    # unmasked vld/vst and full-rate DMA).
    lane_w = None
    for w in (4096, 2048, 1024, 512, 256, 128):
        if total % w == 0 and (total // w) % 8 == 0:
            lane_w = w
            break
    if lane_w is None:
        for w in (4096, 2048, 1024, 512, 256, 128):
            if total % w == 0:
                lane_w = w
                break

    if lane_w is None:
        # Ragged flat size (not divisible by 128): single full-array block.
        # TODO(synk): pad-to-128 tiling path for feature sizes not divisible by 128.
        rows, cols = n, f
        block_rows = rows
        view = x2
    else:
        cols = lane_w
        rows = total // lane_w
        view = x2.reshape(rows, cols)            # metadata-only re-layout
        # Largest block (rows a multiple of 8, dividing `rows`) such that the
        # double-buffered in + out working set (4 * block bytes) fits budget.
        max_rows = max(1, vmem_budget_bytes // (4 * cols * itemsize))
        if rows % 8 == 0:
            block_rows = 8
            r = 16
            while r <= min(rows, max_rows):
                if rows % r == 0:
                    block_rows = r
                r *= 2
        else:
            block_rows = rows                    # full extent (legal block)

    grid = (rows // block_rows,)

    out = pl.pallas_call(
        _copy_kernel,
        out_shape=jax.ShapeDtypeStruct((rows, cols), x2.dtype),
        grid_spec=pltpu.PrefetchScalarGridSpec(
            num_scalar_prefetch=0,
            grid=grid,
            in_specs=[pl.BlockSpec((block_rows, cols), lambda i: (i, 0))],
            out_specs=pl.BlockSpec((block_rows, cols), lambda i: (i, 0)),
        ),
        compiler_params=pltpu.CompilerParams(
            dimension_semantics=("parallel",),   # shards grid across TCs on v7x
            vmem_limit_bytes=32 << 20,           # safe on v5e/v6e/v7x
        ),
        cost_estimate=pl.CostEstimate(
            flops=0, transcendentals=0, bytes_accessed=2 * total * itemsize),
    )(view)
    return out.reshape(n, f)                     # metadata-only


# ---------------------------------------------------------------------------
# Public API: Identity.forward(x) == x.reshape(x.shape[0], -1)
# ---------------------------------------------------------------------------
def identity_flatten(x: jax.Array, *, materialize: bool = False) -> jax.Array:
    n = x.shape[0]
    f = math.prod(x.shape[1:])                   # == 1 for 1-D inputs
    x2 = jnp.reshape(x, (n, f))                  # metadata-only
    if materialize:
        return _identity_flatten_copy(x2)
    try:
        out = _identity_flatten_alias(x2)
        jax.block_until_ready(out)
        return out
    except Exception:
        # Aliasing/donation not available in this environment; fall back to
        # the tuned bandwidth-optimal copy.
        return _identity_flatten_copy(x2)


if __name__ == "__main__":
    key = jax.random.PRNGKey(0)
    # Small NCHW input consistent with a conv-net feature map: (2, 4, 16, 16)
    x = jax.random.normal(key, (2, 4, 16, 16), dtype=jnp.float32)
    ref = x.reshape(x.shape[0], -1)

    # Zero-copy (aliased) path — the recommended production path.
    out_alias = identity_flatten(x)
    jax.block_until_ready(out_alias)

    # Tuned materializing-copy path — kept for when a real copy is required.
    out_copy = identity_flatten(x, materialize=True)
    jax.block_until_ready(out_copy)

    for out in (out_alias, out_copy):
        assert out.shape == (2, 4 * 16 * 16), out.shape
        assert out.dtype == x.dtype
        assert bool(jnp.array_equal(out, ref))

    print("KERNEL_OK")
</pallas_src>

<mosaic_0001>
module attributes {stable_mosaic.version = 11 : i64} {
  func.func @_identity_alias_kernel(%arg0: memref<2x1024xf32, #tpu.memory_space<any>>, %arg1: memref<2x1024xf32, #tpu.memory_space<any>>) attributes {dimension_semantics = [], scalar_prefetch = 0 : i64, scratch_operands = 0 : i64, tpu.core_type = #tpu.core_type<tc>} {
    return
  }
}

module attributes {stable_mosaic.version = 11 : i64} {
  func.func @_copy_kernel(%arg0: i32, %arg1: memref<8x256xf32, #tpu.memory_space<vmem>>, %arg2: memref<8x256xf32, #tpu.memory_space<vmem>>) attributes {dimension_semantics = [#tpu.dimension_semantics<parallel>], iteration_bounds = array<i64: 1>, scalar_prefetch = 0 : i64, scratch_operands = 0 : i64, tpu.core_type = #tpu.core_type<tc>, window_params = [{transform_indices = @transform_0, window_bounds = array<i64: 8, 256>}, {transform_indices = @transform_1, window_bounds = array<i64: 8, 256>}]} {
    %c0 = arith.constant 0 : index
    %c0_0 = arith.constant 0 : index
    %0 = vector.load %arg1[%c0, %c0_0] : memref<8x256xf32, #tpu.memory_space<vmem>>, vector<8x256xf32>
    %c0_1 = arith.constant 0 : index
    %c0_2 = arith.constant 0 : index
    %1 = vector.load %arg2[%c0_1, %c0_2] : memref<8x256xf32, #tpu.memory_space<vmem>>, vector<8x256xf32>
    tpu.vector_store %arg2[%c0_1, %c0_2], %0 {strides = array<i32>} : memref<8x256xf32, #tpu.memory_space<vmem>>, vector<8x256xf32>,
    return
  }
  func.func @transform_0(%arg0: i32) -> (i32, i32) {
    %c0_i32 = arith.constant 0 : i32
    %c0_i32_0 = arith.constant 0 : i32
    return %arg0, %c0_i32 : i32, i32
  }
  func.func @transform_1(%arg0: i32) -> (i32, i32) {
    %c0_i32 = arith.constant 0 : i32
    %c0_i32_0 = arith.constant 0 : i32
    return %arg0, %c0_i32 : i32, i32
  }
}

</mosaic_0001>

<llo_original>
// kernel: tpu_custom_call.1
$region0: #{tpu_custom_call.1}
  #allocation0 [shape = 'u32[]', space=smem, size = 0x4, offset = 0x4, fixed_abs, tag = 'smem constant byte address 0x4 - core index']
  #allocation1 [shape = 'u32[144,128]{1,0:T(1,128)}', space=vmem, size = 0x12000, scoped, tag = 'internal scratch']
  %s0 = inlined_call_operand.hbm [shape: f32[2,1024], index: 0, kind: input, shape index: {}, may-alias: {0,1}]
  %s1 = inlined_call_operand.hbm [shape: f32[2,1024], index: 1, kind: output, shape index: {}, may-alias: {0,1}]
  %s2 = sld [smem:[#allocation0]]
  $region2: #{tpu_custom_call.1} parent=0
    _
  %s4 = ssub.s32 1, %s2
  %s5 = scalar_select 0, %s4, %s2

// kernel: tpu_custom_call.1
$region0: #{tpu_custom_call.1}
  #allocation0 [shape = 'u32[]', space=smem, size = 0x4, offset = 0x4, fixed_abs, tag = 'smem constant byte address 0x4 - core index']
  #allocation1 [shape = 'u32[144,128]{1,0:T(1,128)}', space=vmem, size = 0x12000, scoped, tag = 'internal scratch']
  %s0 = inlined_call_operand.hbm [shape: f32[8,256], index: 0, kind: input, shape index: {}]
  %s1 = inlined_call_operand.hbm [shape: f32[8,256], index: 1, kind: output, shape index: {}]
  %s2 = sld [smem:[#allocation0]]
  $region18: #{tpu_custom_call.1} parent=0
    _
  %s4 = ssub.s32 1, %s2
  %s5 = scalar_select 0, %s4, %s2
  $region1: #{tpu_custom_call.1} parent=0
    #allocation2 [shape = 'u8[8192]{0}', space=vmem, size = 0x2000, scoped, tag = 'input window, operand 0, single buffered']
    #allocation3 [shape = 's32[1]{0}', space=sflag, size = 0x4, scoped, tag = 'scoped memory for tpu_custom_call.1']
    #allocation4 [shape = 's32[1]{0}', space=sflag, size = 0x4, scoped, tag = 'scoped memory for tpu_custom_call.1']
    #allocation5 [shape = 'u8[8192]{0}', space=vmem, size = 0x2000, scoped, tag = 'output window, operand 0, single buffered']
    %6 = vsyncpa [#allocation3], 0
    %7 = vsyncpa [#allocation4], 0
    // Predicated region
    $region2: #{tpu_custom_call.1} parent=1 // pred_check
      _
    $region3: #{tpu_custom_call.1} parent=1 // pred_check_branch
      %9 = sbr.rel (0) target = $region5
    $region4: #{tpu_custom_call.1} parent=1 // pred_region
      %s11 = ssub.s32 256, 256
      %12 = vsyncadd [#allocation3], %s11
      %s14 = sshll.u32 [#allocation2], 4
      %s15 = int_to_ptr.vmem [resolvable:$true] %s14
      %17 = dma.hbm_to_vmem [thread:$0]  %s0, 256, %s15, [#allocation3]
    $region5: #{tpu_custom_call.1} parent=1 // pred_fallthru
      _
    // Predicated region
    $region6: #{tpu_custom_call.1} parent=1 // pred_check
      _
    $region7: #{tpu_custom_call.1} parent=1 // pred_check_branch
      %19 = sbr.rel (0) target = $region9
    $region8: #{tpu_custom_call.1} parent=1 // pred_region
      %20 = dma.done [#allocation3], 256
    $region9: #{tpu_custom_call.1} parent=1 // pred_fallthru
      _
    %v21 = vld [vmem:[#allocation2] sm:$0xff]
    %v22 = vld [vmem:[#allocation2 + $0x8] sm:$0xff]
    %23 = vst [vmem:[#allocation5] sm:$0xff] %v21
    %24 = vst [vmem:[#allocation5 + $0x8] sm:$0xff] %v22
    // Predicated region
    $region10: #{tpu_custom_call.1} parent=1 // pred_check
      _
    $region11: #{tpu_custom_call.1} parent=1 // pred_check_branch
      %26 = sbr.rel (0) target = $region13
    $region12: #{tpu_custom_call.1} parent=1 // pred_region
      %s28 = ssub.s32 256, 256
      %29 = vsyncadd [#allocation4], %s28
      %s31 = sshll.u32 [#allocation5], 4
      %s32 = int_to_ptr.vmem [resolvable:$true] %s31
      %34 = dma.vmem_to_hbm [thread:$0]  %s32, 256, %s1, [#allocation4]
    $region13: #{tpu_custom_call.1} parent=1 // pred_fallthru
      _
    // Predicated region
    $region14: #{tpu_custom_call.1} parent=1 // pred_check
      _
    $region15: #{tpu_custom_call.1} parent=1 // pred_check_branch
      %36 = sbr.rel (0) target = $region17
    $region16: #{tpu_custom_call.1} parent=1 // pred_region
      %37 = dma.done [#allocation4], 256
    $region17: #{tpu_custom_call.1} parent=1 // pred_fallthru
      _
    %38 = vsyncpa [#allocation3], 1
    %39 = vsyncpa [#allocation4], 1

</llo_original>
